<compile_context>
chip_gen: v7x
topology: tpu7x:2x2x1
jax: 0.10.0
libtpu: 0.0.40
codegen_flags: <defaults>
</compile_context>

<pallas_src>
import numpy as np
import jax
import jax.numpy as jnp
from jax.experimental import pallas as pl
from jax.experimental.pallas import tpu as pltpu


def _binomial_filter(filt_size):
    table = {
        1: [1.0],
        2: [1.0, 1.0],
        3: [1.0, 2.0, 1.0],
        4: [1.0, 3.0, 3.0, 1.0],
        5: [1.0, 4.0, 6.0, 4.0, 1.0],
        6: [1.0, 5.0, 10.0, 10.0, 5.0, 1.0],
        7: [1.0, 6.0, 15.0, 20.0, 15.0, 6.0, 1.0],
    }
    return np.asarray(table[filt_size], dtype=np.float64)


def _pad_matrix(n, pad_a, pad_b, pad_type):
    """(n + pad_a + pad_b, n) selection matrix P such that x_padded = P @ x."""
    m = n + pad_a + pad_b
    p = np.zeros((m, n), dtype=np.float64)
    if pad_type == "zero":
        p[pad_a:pad_a + n, :] = np.eye(n)
        return p
    if pad_type in ("refl", "reflect"):
        mode = "reflect"        # matches nn.ReflectionPad2d (no edge repeat)
    elif pad_type in ("repl", "replicate"):
        mode = "edge"           # matches nn.ReplicationPad2d
    else:
        raise ValueError(f"Pad type [{pad_type}] not recognized")
    idx = np.pad(np.arange(n), (pad_a, pad_b), mode=mode)
    p[np.arange(m), idx] = 1.0
    return p


def _decimation_matrix(out_len, padded_len, a, stride):
    # D[i, stride*i + p] = a[p] / sum(a)   (so D_h @ X_pad @ D_w^T == blur+decimate)
    d = np.zeros((out_len, padded_len), dtype=np.float64)
    an = a / a.sum()
    for i in range(out_len):
        d[i, stride * i:stride * i + len(a)] = an
    return d


def _blurpool_kernel(dh_ref, dwt_ref, x_ref, o_ref):
    # dh_ref : (Ho, H)      pad-folded decimating blur along H
    # dwt_ref: (W, Wo)      pad-folded decimating blur along W (pre-transposed)
    # x_ref  : (CB, H, W)   CB unpadded images (N*C merged, blocked by CB)
    # o_ref  : (CB, Ho, Wo)
    cb, h_out, _ = o_ref.shape
    dh = dh_ref[...]
    dwt = dwt_ref[...]
    # H-pass: CB small MXU matmuls (statically unrolled), stacked to (CB*Ho, W).
    y = jnp.concatenate(
        [jnp.dot(dh, x_ref[c], preferred_element_type=jnp.float32)
         for c in range(cb)],
        axis=0)
    # W-pass: ONE fused MXU matmul shared by every channel in the block.
    out = jnp.dot(y, dwt, preferred_element_type=jnp.float32)   # (CB*Ho, Wo)
    for c in range(cb):
        o_ref[c] = out[c * h_out:(c + 1) * h_out, :].astype(o_ref.dtype)


def _largest_divisor_leq(n, cap):
    cap = max(1, min(n, cap))
    for d in range(cap, 0, -1):
        if n % d == 0:
            return d
    return 1


def blurpool(x, *, filt_size=4, stride=2, pad_off=0, pad_type="reflect",
             block_channels=None):
    """Pallas BlurPool forward.  x: [N, C, H, W] float32 -> [N, C, Ho, Wo]."""
    N, C, H, W = x.shape
    pad_a = int(1.0 * (filt_size - 1) / 2) + pad_off
    pad_b = int(np.ceil(1.0 * (filt_size - 1) / 2)) + pad_off
    Hp, Wp = H + pad_a + pad_b, W + pad_a + pad_b
    Ho = (Hp - filt_size) // stride + 1
    Wo = (Wp - filt_size) // stride + 1

    # TODO(synk): filt_size == 1 & pad_off == 0 degenerates to pure strided
    # slicing in the reference; the general matrix path below covers it too.

    a = _binomial_filter(filt_size)
    # Fold the padding into the decimation matrices: D' = D_dec @ P_pad, so the
    # kernel consumes the unpadded x directly (no jnp.pad HBM round trip).
    dh = _decimation_matrix(Ho, Hp, a, stride) @ _pad_matrix(H, pad_a, pad_b, pad_type)
    dw = _decimation_matrix(Wo, Wp, a, stride) @ _pad_matrix(W, pad_a, pad_b, pad_type)
    dh = jnp.asarray(dh.astype(np.float32))        # (Ho, H)
    dwt = jnp.asarray(dw.T.astype(np.float32))     # (W, Wo)

    NC = N * C
    if block_channels is None:
        # Double-buffered in+out block must fit comfortably in scoped VMEM
        # (sized so the same choice also fits v7x's smaller 64 MiB VMEM).
        budget = 12 * 1024 * 1024
        cap = budget // (2 * 4 * (H * W + Ho * Wo))
        cap = min(cap, 32)
        if NC >= 2:                     # keep >=2 grid steps for v7x's 2 TCs
            cap = min(cap, NC // 2)
        block_channels = _largest_divisor_leq(NC, cap)
    CB = block_channels
    assert NC % CB == 0

    xf = x.reshape(NC, H, W)            # collapse of leading dims: free reshape

    cost = pl.CostEstimate(
        flops=2 * NC * (Ho * H * W + Ho * W * Wo),
        transcendentals=0,
        bytes_accessed=4 * (NC * (H * W + Ho * Wo) + Ho * H + W * Wo),
    )

    out = pl.pallas_call(
        _blurpool_kernel,
        out_shape=jax.ShapeDtypeStruct((NC, Ho, Wo), x.dtype),
        grid_spec=pltpu.PrefetchScalarGridSpec(
            num_scalar_prefetch=0,
            grid=(NC // CB,),
            in_specs=[
                pl.BlockSpec((Ho, H), lambda i: (0, 0)),      # stays resident
                pl.BlockSpec((W, Wo), lambda i: (0, 0)),      # stays resident
                pl.BlockSpec((CB, H, W), lambda i: (i, 0, 0)),
            ],
            out_specs=pl.BlockSpec((CB, Ho, Wo), lambda i: (i, 0, 0)),
        ),
        compiler_params=pltpu.CompilerParams(
            dimension_semantics=("parallel",),
            vmem_limit_bytes=48 * 1024 * 1024),
        cost_estimate=cost,
    )(dh, dwt, xf)
    return out.reshape(N, C, Ho, Wo)


def _pad_mode(pad_type):
    if pad_type in ("refl", "reflect"):
        return "reflect"
    if pad_type in ("repl", "replicate"):
        return "edge"
    if pad_type == "zero":
        return "constant"
    raise ValueError(f"Pad type [{pad_type}] not recognized")


def blurpool_ref(x, *, filt_size=4, stride=2, pad_off=0, pad_type="reflect"):
    """Pure-JAX reference mirroring F.conv2d(pad(x), filt, stride, groups=C)."""
    N, C, H, W = x.shape
    pad_a = int(1.0 * (filt_size - 1) / 2) + pad_off
    pad_b = int(np.ceil(1.0 * (filt_size - 1) / 2)) + pad_off
    xp = jnp.pad(x, ((0, 0), (0, 0), (pad_a, pad_b), (pad_a, pad_b)),
                 mode=_pad_mode(pad_type))
    a = _binomial_filter(filt_size)
    filt = a[:, None] * a[None, :]
    filt = filt / filt.sum()
    w = jnp.asarray(np.broadcast_to(filt, (C, 1, filt_size, filt_size)),
                    dtype=x.dtype)
    return jax.lax.conv_general_dilated(
        xp, w, window_strides=(stride, stride), padding="VALID",
        dimension_numbers=("NCHW", "OIHW", "NCHW"), feature_group_count=C)


if __name__ == "__main__":
    key = jax.random.PRNGKey(0)
    N, C, H, W = 2, 4, 16, 16
    x = jax.random.normal(key, (N, C, H, W), dtype=jnp.float32)

    out = blurpool(x)                      # (2, 4, 8, 8)
    out = jax.block_until_ready(out)

    ref = jax.block_until_ready(blurpool_ref(x))
    np.testing.assert_allclose(np.asarray(out), np.asarray(ref),
                               rtol=1e-5, atol=1e-5)
    assert out.shape == (N, C, H // 2, W // 2)
    print("KERNEL_OK")
</pallas_src>

<mosaic_0001>
module attributes {stable_mosaic.version = 11 : i64} {
  func.func @_blurpool_kernel(%arg0: i32, %arg1: memref<8x16xf32, #tpu.memory_space<vmem>>, %arg2: memref<16x8xf32, #tpu.memory_space<vmem>>, %arg3: memref<4x16x16xf32, #tpu.memory_space<vmem>>, %arg4: memref<4x8x8xf32, #tpu.memory_space<vmem>>) attributes {dimension_semantics = [#tpu.dimension_semantics<parallel>], iteration_bounds = array<i64: 2>, scalar_prefetch = 0 : i64, scratch_operands = 0 : i64, tpu.core_type = #tpu.core_type<tc>, window_params = [{pipeline_mode = #tpu.pipeline_mode<synchronous>, transform_indices = @transform_0, window_bounds = array<i64: 8, 16>}, {pipeline_mode = #tpu.pipeline_mode<synchronous>, transform_indices = @transform_1, window_bounds = array<i64: 16, 8>}, {transform_indices = @transform_2, window_bounds = array<i64: 4, 16, 16>}, {transform_indices = @transform_3, window_bounds = array<i64: 4, 8, 8>}]} {
    %c0 = arith.constant 0 : index
    %c0_0 = arith.constant 0 : index
    %0 = vector.load %arg1[%c0, %c0_0] : memref<8x16xf32, #tpu.memory_space<vmem>>, vector<8x16xf32>
    %c0_1 = arith.constant 0 : index
    %c0_2 = arith.constant 0 : index
    %1 = vector.load %arg2[%c0_1, %c0_2] : memref<16x8xf32, #tpu.memory_space<vmem>>, vector<16x8xf32>
    %c0_3 = arith.constant 0 : index
    %c0_4 = arith.constant 0 : index
    %c0_5 = arith.constant 0 : index
    %2 = vector.load %arg3[%c0_3, %c0_4, %c0_5] : memref<4x16x16xf32, #tpu.memory_space<vmem>>, vector<1x16x16xf32>
    %3 = vector.shape_cast %2 : vector<1x16x16xf32> to vector<16x16xf32>
    %cst = arith.constant dense<0.000000e+00> : vector<8x16xf32>
    %4 = tpu.matmul %0, %3, %cst {dimension_numbers = #tpu.dot_dimension_numbers<[1], [0], [0], [1], [0, 0, 1, 1], [], []>} : vector<8x16xf32>, vector<16x16xf32>, vector<8x16xf32> -> vector<8x16xf32>
    %c1 = arith.constant 1 : index
    %c0_6 = arith.constant 0 : index
    %c0_7 = arith.constant 0 : index
    %5 = vector.load %arg3[%c1, %c0_6, %c0_7] : memref<4x16x16xf32, #tpu.memory_space<vmem>>, vector<1x16x16xf32>
    %6 = vector.shape_cast %5 : vector<1x16x16xf32> to vector<16x16xf32>
    %cst_8 = arith.constant dense<0.000000e+00> : vector<8x16xf32>
    %7 = tpu.matmul %0, %6, %cst_8 {dimension_numbers = #tpu.dot_dimension_numbers<[1], [0], [0], [1], [0, 0, 1, 1], [], []>} : vector<8x16xf32>, vector<16x16xf32>, vector<8x16xf32> -> vector<8x16xf32>
    %c2 = arith.constant 2 : index
    %c0_9 = arith.constant 0 : index
    %c0_10 = arith.constant 0 : index
    %8 = vector.load %arg3[%c2, %c0_9, %c0_10] : memref<4x16x16xf32, #tpu.memory_space<vmem>>, vector<1x16x16xf32>
    %9 = vector.shape_cast %8 : vector<1x16x16xf32> to vector<16x16xf32>
    %cst_11 = arith.constant dense<0.000000e+00> : vector<8x16xf32>
    %10 = tpu.matmul %0, %9, %cst_11 {dimension_numbers = #tpu.dot_dimension_numbers<[1], [0], [0], [1], [0, 0, 1, 1], [], []>} : vector<8x16xf32>, vector<16x16xf32>, vector<8x16xf32> -> vector<8x16xf32>
    %c3 = arith.constant 3 : index
    %c0_12 = arith.constant 0 : index
    %c0_13 = arith.constant 0 : index
    %11 = vector.load %arg3[%c3, %c0_12, %c0_13] : memref<4x16x16xf32, #tpu.memory_space<vmem>>, vector<1x16x16xf32>
    %12 = vector.shape_cast %11 : vector<1x16x16xf32> to vector<16x16xf32>
    %cst_14 = arith.constant dense<0.000000e+00> : vector<8x16xf32>
    %13 = tpu.matmul %0, %12, %cst_14 {dimension_numbers = #tpu.dot_dimension_numbers<[1], [0], [0], [1], [0, 0, 1, 1], [], []>} : vector<8x16xf32>, vector<16x16xf32>, vector<8x16xf32> -> vector<8x16xf32>
    %14 = tpu.concatenate %4, %7, %10, %13 in 0 : vector<8x16xf32>, vector<8x16xf32>, vector<8x16xf32>, vector<8x16xf32> -> vector<32x16xf32>
    %cst_15 = arith.constant dense<0.000000e+00> : vector<32x8xf32>
    %15 = tpu.matmul %14, %1, %cst_15 {dimension_numbers = #tpu.dot_dimension_numbers<[1], [0], [0], [1], [0, 0, 1, 1], [], []>} : vector<32x16xf32>, vector<16x8xf32>, vector<32x8xf32> -> vector<32x8xf32>
    %16 = vector.extract_strided_slice %15 {offsets = [0, 0], sizes = [8, 8], strides = [1, 1]} : vector<32x8xf32> to vector<8x8xf32>
    %c0_16 = arith.constant 0 : index
    %c0_17 = arith.constant 0 : index
    %c0_18 = arith.constant 0 : index
    %17 = vector.load %arg4[%c0_16, %c0_17, %c0_18] : memref<4x8x8xf32, #tpu.memory_space<vmem>>, vector<1x8x8xf32>
    %18 = vector.shape_cast %17 : vector<1x8x8xf32> to vector<8x8xf32>
    %19 = vector.shape_cast %16 : vector<8x8xf32> to vector<1x8x8xf32>
    tpu.vector_store %arg4[%c0_16, %c0_17, %c0_18], %19 {strides = array<i32>} : memref<4x8x8xf32, #tpu.memory_space<vmem>>, vector<1x8x8xf32>,
    %20 = vector.extract_strided_slice %15 {offsets = [8, 0], sizes = [8, 8], strides = [1, 1]} : vector<32x8xf32> to vector<8x8xf32>
    %c1_19 = arith.constant 1 : index
    %c0_20 = arith.constant 0 : index
    %c0_21 = arith.constant 0 : index
    %21 = vector.load %arg4[%c1_19, %c0_20, %c0_21] : memref<4x8x8xf32, #tpu.memory_space<vmem>>, vector<1x8x8xf32>
    %22 = vector.shape_cast %21 : vector<1x8x8xf32> to vector<8x8xf32>
    %23 = vector.shape_cast %20 : vector<8x8xf32> to vector<1x8x8xf32>
    tpu.vector_store %arg4[%c1_19, %c0_20, %c0_21], %23 {strides = array<i32>} : memref<4x8x8xf32, #tpu.memory_space<vmem>>, vector<1x8x8xf32>,
    %24 = vector.extract_strided_slice %15 {offsets = [16, 0], sizes = [8, 8], strides = [1, 1]} : vector<32x8xf32> to vector<8x8xf32>
    %c2_22 = arith.constant 2 : index
    %c0_23 = arith.constant 0 : index
    %c0_24 = arith.constant 0 : index
    %25 = vector.load %arg4[%c2_22, %c0_23, %c0_24] : memref<4x8x8xf32, #tpu.memory_space<vmem>>, vector<1x8x8xf32>
    %26 = vector.shape_cast %25 : vector<1x8x8xf32> to vector<8x8xf32>
    %27 = vector.shape_cast %24 : vector<8x8xf32> to vector<1x8x8xf32>
    tpu.vector_store %arg4[%c2_22, %c0_23, %c0_24], %27 {strides = array<i32>} : memref<4x8x8xf32, #tpu.memory_space<vmem>>, vector<1x8x8xf32>,
    %28 = vector.extract_strided_slice %15 {offsets = [24, 0], sizes = [8, 8], strides = [1, 1]} : vector<32x8xf32> to vector<8x8xf32>
    %c3_25 = arith.constant 3 : index
    %c0_26 = arith.constant 0 : index
    %c0_27 = arith.constant 0 : index
    %29 = vector.load %arg4[%c3_25, %c0_26, %c0_27] : memref<4x8x8xf32, #tpu.memory_space<vmem>>, vector<1x8x8xf32>
    %30 = vector.shape_cast %29 : vector<1x8x8xf32> to vector<8x8xf32>
    %31 = vector.shape_cast %28 : vector<8x8xf32> to vector<1x8x8xf32>
    tpu.vector_store %arg4[%c3_25, %c0_26, %c0_27], %31 {strides = array<i32>} : memref<4x8x8xf32, #tpu.memory_space<vmem>>, vector<1x8x8xf32>,
    return
  }
  func.func @transform_0(%arg0: i32) -> (i32, i32) {
    %c0_i32 = arith.constant 0 : i32
    %c0_i32_0 = arith.constant 0 : i32
    %c0_i32_1 = arith.constant 0 : i32
    return %c0_i32, %c0_i32_0 : i32, i32
  }
  func.func @transform_1(%arg0: i32) -> (i32, i32) {
    %c0_i32 = arith.constant 0 : i32
    %c0_i32_0 = arith.constant 0 : i32
    %c0_i32_1 = arith.constant 0 : i32
    return %c0_i32, %c0_i32_0 : i32, i32
  }
  func.func @transform_2(%arg0: i32) -> (i32, i32, i32) {
    %c0_i32 = arith.constant 0 : i32
    %c0_i32_0 = arith.constant 0 : i32
    %c0_i32_1 = arith.constant 0 : i32
    return %arg0, %c0_i32, %c0_i32_0 : i32, i32, i32
  }
  func.func @transform_3(%arg0: i32) -> (i32, i32, i32) {
    %c0_i32 = arith.constant 0 : i32
    %c0_i32_0 = arith.constant 0 : i32
    %c0_i32_1 = arith.constant 0 : i32
    return %arg0, %c0_i32, %c0_i32_0 : i32, i32, i32
  }
}

</mosaic_0001>

<llo_original>
// kernel: tpu_custom_call.1
$region0: #{tpu_custom_call.1}
  #allocation0 [shape = 'u32[]', space=smem, size = 0x4, offset = 0x4, fixed_abs, tag = 'smem constant byte address 0x4 - core index']
  #allocation1 [shape = 'u32[144,128]{1,0:T(1,128)}', space=vmem, size = 0x12000, scoped, tag = 'internal scratch']
  %s0 = inlined_call_operand.vmem [shape: f32[8,16], index: 0, kind: input, shape index: {}]
  %s1 = inlined_call_operand.vmem [shape: f32[16,8], index: 1, kind: input, shape index: {}]
  %s2 = inlined_call_operand.hbm [shape: f32[8,16,16], index: 2, kind: input, shape index: {}]
  %s3 = inlined_call_operand.hbm [shape: f32[8,8,8], index: 3, kind: output, shape index: {}]
  %s4 = sld [smem:[#allocation0]]
  $region49: #{tpu_custom_call.1} parent=0
    _
  %s6 = ssub.s32 1, %s4
  %s7 = scalar_select 0, %s6, %s4
  $region1: #{tpu_custom_call.1} parent=0
    #allocation2 [shape = 'u8[65536]{0}', space=vmem, size = 0x10000, scoped, tag = 'input window, operand 2']
    #allocation3 [shape = 's32[2]{0}', space=sflag, size = 0x8, scoped, tag = 'scoped memory for tpu_custom_call.1']
    #allocation4 [shape = 's32[2]{0}', space=sflag, size = 0x8, scoped, tag = 'scoped memory for tpu_custom_call.1']
    #allocation5 [shape = 'u8[32768]{0}', space=vmem, size = 0x8000, scoped, tag = 'output window, operand 0']
    %8 = vsyncpa [#allocation3], 0
    %s9 = scalar_lea.sflag [#allocation3], 1
    %10 = vsyncpa %s9, 0
    %11 = vsyncpa [#allocation4], 0
    %s12 = scalar_lea.sflag [#allocation4], 1
    %13 = vsyncpa %s12, 0
    loop: start=0, step=1, limit=4
    $region2: #{tpu_custom_call.1} parent=1 // loop_pre_header
      _
    $region3: #{tpu_custom_call.1} parent=1 // loop_header
      %s15 = sphi 0, %s19
      %p16 = scmp.ge.s32.totalorder %s15, 4
      %s23 = sphi 0, %s23
      %s25 = sphi 0, %s23
      %s26 = sphi 0, %s25
      %s40 = sphi 0, %s26
      %s44 = sphi 0, %s44
      %s46 = sphi 0, %s44
      %s47 = sphi 0, %s46
      %s61 = sphi 0, %s47
      %s67 = sphi 0, %s69
      %s70 = sphi 0, %s67
      %s71 = sphi 0, %s70
      %s87 = sphi 0, %s71
      %s93 = sphi 0, %s95
      %s96 = sphi 0, %s93
      %s97 = sphi 0, %s96
      %s113 = sphi 0, %s97
    $region4: #{tpu_custom_call.1} parent=1 // loop_header_branch
      %18 = sbr.rel (%p16) target = $region8
    $region5: #{tpu_custom_call.1} parent=1 // loop_body
      %s20 = ssub.s32 %s15, 1
      %s21 = ssub.s32 %s15, 2
      %s22 = sadd.s32 %s15, 1
      %s24 = sadd.s32 %s23, 1
      %p27 = scmp.eq.s32.totalorder %s15, 1
      %p28 = scmp.ne.s32.totalorder %s23, %s25
      %p29 = scmp.eq.s32.totalorder %s15, 0
      %p30 = por %p28, %p29
      %p31 = scmp.ne.s32.totalorder %s23, %s25
      %p32 = scmp.eq.s32.totalorder %s20, 1
      %p33 = por %p31, %p32
      %p34 = scmp.ne.s32.totalorder %s25, %s26
      %p35 = scmp.eq.s32.totalorder %s20, 0
      %p36 = por %p34, %p35
      %p37 = scmp.ne.s32.totalorder %s25, %s26
      %p38 = scmp.eq.s32.totalorder %s21, 1
      %p39 = por %p37, %p38
      %p41 = scmp.ne.s32.totalorder %s26, %s40
      %p42 = scmp.eq.s32.totalorder %s21, 0
      %p43 = por %p41, %p42
      %s45 = sadd.s32 %s44, 1
      %p48 = scmp.eq.s32.totalorder %s15, 1
      %p49 = scmp.ne.s32.totalorder %s44, %s46
      %p50 = scmp.eq.s32.totalorder %s15, 0
      %p51 = por %p49, %p50
      %p52 = scmp.ne.s32.totalorder %s44, %s46
      %p53 = scmp.eq.s32.totalorder %s20, 1
      %p54 = por %p52, %p53
      %p55 = scmp.ne.s32.totalorder %s46, %s47
      %p56 = scmp.eq.s32.totalorder %s20, 0
      %p57 = por %p55, %p56
      %p58 = scmp.ne.s32.totalorder %s46, %s47
      %p59 = scmp.eq.s32.totalorder %s21, 1
      %p60 = por %p58, %p59
      %p62 = scmp.ne.s32.totalorder %s47, %s61
      %p63 = scmp.eq.s32.totalorder %s21, 0
      %p64 = por %p62, %p63
      %s65 = ssub.s32 %s15, %s22
      %p66 = scmp.eq.s32.totalorder %s65, 0
      %s68 = sadd.s32 %s67, 1
      %s69 = scalar_select %p66, %s67, %s68
      %p72 = pneg %p66
      %p73 = scmp.eq.s32.totalorder %s15, 1
      %p74 = por %p72, %p73
      %p75 = scmp.ne.s32.totalorder %s67, %s70
      %p76 = scmp.eq.s32.totalorder %s15, 0
      %p77 = por %p75, %p76
      %p78 = scmp.ne.s32.totalorder %s67, %s70
      %p79 = scmp.eq.s32.totalorder %s20, 1
      %p80 = por %p78, %p79
      %p81 = scmp.ne.s32.totalorder %s70, %s71
      %p82 = scmp.eq.s32.totalorder %s20, 0
      %p83 = por %p81, %p82
      %p84 = scmp.ne.s32.totalorder %s70, %s71
      %p85 = scmp.eq.s32.totalorder %s21, 1
      %p86 = por %p84, %p85
      %p88 = scmp.ne.s32.totalorder %s71, %s87
      %p89 = scmp.eq.s32.totalorder %s21, 0
      %p90 = por %p88, %p89
      %s91 = ssub.s32 %s15, %s22
      %p92 = scmp.eq.s32.totalorder %s91, 0
      %s94 = sadd.s32 %s93, 1
      %s95 = scalar_select %p92, %s93, %s94
      %p98 = pneg %p92
      %p99 = scmp.eq.s32.totalorder %s15, 1
      %p100 = por %p98, %p99
      %p101 = scmp.ne.s32.totalorder %s93, %s96
      %p102 = scmp.eq.s32.totalorder %s15, 0
      %p103 = por %p101, %p102
      %p104 = scmp.ne.s32.totalorder %s93, %s96
      %p105 = scmp.eq.s32.totalorder %s20, 1
      %p106 = por %p104, %p105
      %p107 = scmp.ne.s32.totalorder %s96, %s97
      %p108 = scmp.eq.s32.totalorder %s20, 0
      %p109 = por %p107, %p108
      %p110 = scmp.ne.s32.totalorder %s96, %s97
      %p111 = scmp.eq.s32.totalorder %s21, 1
      %p112 = por %p110, %p111
      %p114 = scmp.ne.s32.totalorder %s97, %s113
      %p115 = scmp.eq.s32.totalorder %s21, 0
      %p116 = por %p114, %p115
      %p117 = scmp.le.s32.totalorder 1, %s15
      %p118 = scmp.lt.s32.totalorder %s15, 3
      %p119 = pnand %p117, %p118
      %p120 = pneg %p119
      // Predicated region
      $region9: #{tpu_custom_call.1} parent=5 // pred_check
        _
      $region10: #{tpu_custom_call.1} parent=5 // pred_check_branch
        %122 = sbr.rel (%p119) target = $region12
      $region11: #{tpu_custom_call.1} parent=5 // pred_region
        %s123 = ssub.s32 %s15, 1
        // Predicated region
        $region13: #{tpu_custom_call.1} parent=11 // pred_check
          %p124 = pneg %p36
        $region14: #{tpu_custom_call.1} parent=11 // pred_check_branch
          %126 = sbr.rel (%p124) target = $region16
        $region15: #{tpu_custom_call.1} parent=11 // pred_region
          _
        $region16: #{tpu_custom_call.1} parent=11 // pred_fallthru
          _
        // Predicated region
        $region17: #{tpu_custom_call.1} parent=11 // pred_check
          %p127 = pneg %p57
        $region18: #{tpu_custom_call.1} parent=11 // pred_check_branch
          %129 = sbr.rel (%p127) target = $region20
        $region19: #{tpu_custom_call.1} parent=11 // pred_region
          _
        $region20: #{tpu_custom_call.1} parent=11 // pred_fallthru
          _
      $region12: #{tpu_custom_call.1} parent=5 // pred_fallthru
        _
      %p130 = scmp.lt.s32.totalorder %s15, 2
      // Predicated region
      $region21: #{tpu_custom_call.1} parent=5 // pred_check
        %p131 = pneg %p130
      $region22: #{tpu_custom_call.1} parent=5 // pred_check_branch
        %133 = sbr.rel (%p131) target = $region24
      $region23: #{tpu_custom_call.1} parent=5 // pred_region
        // Predicated region
        $region25: #{tpu_custom_call.1} parent=23 // pred_check
          %p134 = pneg %p77
        $region26: #{tpu_custom_call.1} parent=23 // pred_check_branch
          %136 = sbr.rel (%p134) target = $region28
        $region27: #{tpu_custom_call.1} parent=23 // pred_region
          %s137 = sand.u32 %s67, 1
          %s138 = scalar_lea.sflag [#allocation3], %s137
          %s139 = sand.u32 %s67, 1
          %s140 = smul.addr %s139, 64
          %s141 = scalar_lea.vmem [#allocation2], %s140
          %s142 = smul.u32 4, %s15
          %s144 = ssub.s32 1024, 1024
          %145 = vsyncadd %s138, %s144
          %s146 = smul.addr %s142, 2
          %s147 = smul.addr %s146, 128
          %s148 = scalar_lea.hbm %s2, %s147
          %s149 = sshll.u32 %s141, 4
          %s150 = int_to_ptr.vmem [resolvable:$true] %s149
          %155 = dma.hbm_to_vmem [thread:$0]  %s148, 1024, %s150, %s138, 128, 128, 8
        $region28: #{tpu_custom_call.1} parent=23 // pred_fallthru
          _
      $region24: #{tpu_custom_call.1} parent=5 // pred_fallthru
        _
      %p156 = scmp.le.s32.totalorder 1, %s15
      %p157 = scmp.lt.s32.totalorder %s15, 3
      %p158 = pnand %p156, %p157
      %p159 = pneg %p158
      // Predicated region
      $region29: #{tpu_custom_call.1} parent=5 // pred_check
        _
      $region30: #{tpu_custom_call.1} parent=5 // pred_check_branch
        %161 = sbr.rel (%p158) target = $region32
      $region31: #{tpu_custom_call.1} parent=5 // pred_region
        %s162 = ssub.s32 %s15, 1
        %s163 = sand.u32 %s70, 1
        %s164 = scalar_lea.sflag [#allocation3], %s163
        %s165 = sand.u32 %s70, 1
        %s166 = smul.addr %s165, 64
        %s167 = scalar_lea.vmem [#allocation2], %s166
        // Predicated region
        $region33: #{tpu_custom_call.1} parent=31 // pred_check
          %p168 = pneg %p83
        $region34: #{tpu_custom_call.1} parent=31 // pred_check_branch
          %170 = sbr.rel (%p168) target = $region36
        $region35: #{tpu_custom_call.1} parent=31 // pred_region
          %171 = dma.done %s164, 1024
        $region36: #{tpu_custom_call.1} parent=31 // pred_fallthru
          _
        %p172 = pneg %p36
        %p173 = pneg %p33
        %p174 = pneg %p57
        %p175 = pneg %p54
        %s176 = sand.u32 %s70, 1
        %s177 = scalar_lea.sflag [#allocation3], %s176
        %s178 = sand.u32 %s70, 1
        %s179 = smul.addr %s178, 64
        %s180 = scalar_lea.vmem [#allocation2], %s179
        %p181 = pneg %p83
        %p182 = pneg %p80
        %p183 = pneg %p109
        %p184 = pneg %p106
        %s185 = sand.u32 %s96, 1
        %s186 = scalar_lea.sflag [#allocation4], %s185
        %s187 = sand.u32 %s96, 1
        %s188 = smul.addr %s187, 32
        %s189 = scalar_lea.vmem [#allocation5], %s188
        %s190 = smul.u32 4, %s20
        %s191 = smul.u32 4, %s20
        %v192 = vld [vmem:[%s0] sm:$0xff]
        %v193 = vld [vmem:[%s1] sm:$0xff]
        %v194 = vld [vmem:[%s1 + $0x8] sm:$0xff]
        %v195 = vld [vmem:[%s167] sm:$0xff]
        %v196 = vld [vmem:[%s167 + $0x8] sm:$0xff]
        %vm197 = vcmask 130048
        %v199 = vsel %vm197, %v192, 0
        %201 = vmatprep.subr.mxu0 0.0
        %202 = vmatpush1.msra.mxu0 %v195
        %203 = vmatprep.subr.mxu0 0.0
        %204 = vmatpush1.msra.mxu0 %v196
        %205 = vmatprep.subr.mxu0 0.0
        %206 = vmatpush1.msra.mxu0 0.0
        %207 = vmatprep.subr.mxu0 0.0
        %208 = vmatpush1.msra.mxu0 0.0
        %209 = vmatprep.subr.mxu0 0.0
        %210 = vmatpush1.msra.mxu0 0.0
        %211 = vmatprep.subr.mxu0 0.0
        %212 = vmatpush1.msra.mxu0 0.0
        %213 = vmatprep.subr.mxu0 0.0
        %214 = vmatpush1.msra.mxu0 0.0
        %215 = vmatprep.subr.mxu0 0.0
        %216 = vmatpush1.msra.mxu0 0.0
        %217 = vmatprep.subr.mxu0 0.0
        %218 = vmatpush1.msra.mxu0 0.0
        %219 = vmatprep.subr.mxu0 0.0
        %220 = vmatpush1.msra.mxu0 0.0
        %221 = vmatprep.subr.mxu0 0.0
        %222 = vmatpush1.msra.mxu0 0.0
        %223 = vmatprep.subr.mxu0 0.0
        %224 = vmatpush1.msra.mxu0 0.0
        %225 = vmatprep.subr.mxu0 0.0
        %226 = vmatpush1.msra.mxu0 0.0
        %227 = vmatprep.subr.mxu0 0.0
        %228 = vmatpush1.msra.mxu0 0.0
        %229 = vmatprep.subr.mxu0 0.0
        %230 = vmatpush1.msra.mxu0 0.0
        %231 = vmatprep.subr.mxu0 0.0
        %232 = vmatpush1.msra.mxu0 0.0
        %233 = vmatprep.subr.mxu0 0.0
        %234 = vmatpush1.msra.mxu0 0.0
        %235 = vmatprep.subr.mxu0 0.0
        %236 = vmatpush1.msra.mxu0 0.0
        %237 = vmatprep.subr.mxu0 0.0
        %238 = vmatpush1.msra.mxu0 0.0
        %239 = vmatprep.subr.mxu0 0.0
        %240 = vmatpush1.msra.mxu0 0.0
        %241 = vmatprep.subr.mxu0 0.0
        %242 = vmatpush1.msra.mxu0 0.0
        %243 = vmatprep.subr.mxu0 0.0
        %244 = vmatpush1.msra.mxu0 0.0
        %245 = vmatprep.subr.mxu0 0.0
        %246 = vmatpush1.msra.mxu0 0.0
        %247 = vmatprep.subr.mxu0 0.0
        %248 = vmatpush1.msra.mxu0 0.0
        %249 = vmatprep.subr.mxu0 0.0
        %250 = vmatpush1.msra.mxu0 0.0
        %251 = vmatprep.subr.mxu0 0.0
        %252 = vmatpush1.msra.mxu0 0.0
        %253 = vmatprep.subr.mxu0 0.0
        %254 = vmatpush1.msra.mxu0 0.0
        %255 = vmatprep.subr.mxu0 0.0
        %256 = vmatpush1.msra.mxu0 0.0
        %257 = vmatprep.subr.mxu0 0.0
        %258 = vmatpush1.msra.mxu0 0.0
        %259 = vmatprep.subr.mxu0 0.0
        %260 = vmatpush1.msra.mxu0 0.0
        %261 = vmatprep.subr.mxu0 0.0
        %262 = vmatpush1.msra.mxu0 0.0
        %263 = vmatprep.subr.mxu0 0.0
        %264 = vmatpush1.msra.mxu0 0.0
        %265 = vmatprep.mubr.f32.mxu0 0.0
        %266 = vmatmul.mubr.f32.gmra.mrb[0].mxu0 %v199
        %v267 = vpop.f32.mrb[0].mxu0
        %v268 = vadd.f32 0.0, %v267
        %v269 = vpop.f32.mrb[0].mxu0
        %270 = vdwg.mxu0
        %s271 = scalar_lea.vmem %s167, 16 [#allocation2]
        %v272 = vld [vmem:[%s271] sm:$0xff]
        %v273 = vld [vmem:[%s271 + $0x8] sm:$0xff]
        %274 = vmatprep.subr.mxu0 0.0
        %275 = vmatpush1.msra.mxu0 %v272
        %276 = vmatprep.subr.mxu0 0.0
        %277 = vmatpush1.msra.mxu0 %v273
        %278 = vmatprep.subr.mxu0 0.0
        %279 = vmatpush1.msra.mxu0 0.0
        %280 = vmatprep.subr.mxu0 0.0
        %281 = vmatpush1.msra.mxu0 0.0
        %282 = vmatprep.subr.mxu0 0.0
        %283 = vmatpush1.msra.mxu0 0.0
        %284 = vmatprep.subr.mxu0 0.0
        %285 = vmatpush1.msra.mxu0 0.0
        %286 = vmatprep.subr.mxu0 0.0
        %287 = vmatpush1.msra.mxu0 0.0
        %288 = vmatprep.subr.mxu0 0.0
        %289 = vmatpush1.msra.mxu0 0.0
        %290 = vmatprep.subr.mxu0 0.0
        %291 = vmatpush1.msra.mxu0 0.0
        %292 = vmatprep.subr.mxu0 0.0
        %293 = vmatpush1.msra.mxu0 0.0
        %294 = vmatprep.subr.mxu0 0.0
        %295 = vmatpush1.msra.mxu0 0.0
        %296 = vmatprep.subr.mxu0 0.0
        %297 = vmatpush1.msra.mxu0 0.0
        %298 = vmatprep.subr.mxu0 0.0
        %299 = vmatpush1.msra.mxu0 0.0
        %300 = vmatprep.subr.mxu0 0.0
        %301 = vmatpush1.msra.mxu0 0.0
        %302 = vmatprep.subr.mxu0 0.0
        %303 = vmatpush1.msra.mxu0 0.0
        %304 = vmatprep.subr.mxu0 0.0
        %305 = vmatpush1.msra.mxu0 0.0
        %306 = vmatprep.subr.mxu0 0.0
        %307 = vmatpush1.msra.mxu0 0.0
        %308 = vmatprep.subr.mxu0 0.0
        %309 = vmatpush1.msra.mxu0 0.0
        %310 = vmatprep.subr.mxu0 0.0
        %311 = vmatpush1.msra.mxu0 0.0
        %312 = vmatprep.subr.mxu0 0.0
        %313 = vmatpush1.msra.mxu0 0.0
        %314 = vmatprep.subr.mxu0 0.0
        %315 = vmatpush1.msra.mxu0 0.0
        %316 = vmatprep.subr.mxu0 0.0
        %317 = vmatpush1.msra.mxu0 0.0
        %318 = vmatprep.subr.mxu0 0.0
        %319 = vmatpush1.msra.mxu0 0.0
        %320 = vmatprep.subr.mxu0 0.0
        %321 = vmatpush1.msra.mxu0 0.0
        %322 = vmatprep.subr.mxu0 0.0
        %323 = vmatpush1.msra.mxu0 0.0
        %324 = vmatprep.subr.mxu0 0.0
        %325 = vmatpush1.msra.mxu0 0.0
        %326 = vmatprep.subr.mxu0 0.0
        %327 = vmatpush1.msra.mxu0 0.0
        %328 = vmatprep.subr.mxu0 0.0
        %329 = vmatpush1.msra.mxu0 0.0
        %330 = vmatprep.subr.mxu0 0.0
        %331 = vmatpush1.msra.mxu0 0.0
        %332 = vmatprep.subr.mxu0 0.0
        %333 = vmatpush1.msra.mxu0 0.0
        %334 = vmatprep.subr.mxu0 0.0
        %335 = vmatpush1.msra.mxu0 0.0
        %336 = vmatprep.subr.mxu0 0.0
        %337 = vmatpush1.msra.mxu0 0.0
        %338 = vmatprep.mubr.f32.mxu0 0.0
        %339 = vmatmul.mubr.f32.gmra.mrb[0].mxu0 %v199
        %v340 = vpop.f32.mrb[0].mxu0
        %v341 = vadd.f32 0.0, %v340
        %v342 = vpop.f32.mrb[0].mxu0
        %343 = vdwg.mxu0
        %s344 = scalar_lea.vmem %s167, 32 [#allocation2]
        %v345 = vld [vmem:[%s344] sm:$0xff]
        %v346 = vld [vmem:[%s344 + $0x8] sm:$0xff]
        %347 = vmatprep.subr.mxu0 0.0
        %348 = vmatpush1.msra.mxu0 %v345
        %349 = vmatprep.subr.mxu0 0.0
        %350 = vmatpush1.msra.mxu0 %v346
        %351 = vmatprep.subr.mxu0 0.0
        %352 = vmatpush1.msra.mxu0 0.0
        %353 = vmatprep.subr.mxu0 0.0
        %354 = vmatpush1.msra.mxu0 0.0
        %355 = vmatprep.subr.mxu0 0.0
        %356 = vmatpush1.msra.mxu0 0.0
        %357 = vmatprep.subr.mxu0 0.0
        %358 = vmatpush1.msra.mxu0 0.0
        %359 = vmatprep.subr.mxu0 0.0
        %360 = vmatpush1.msra.mxu0 0.0
        %361 = vmatprep.subr.mxu0 0.0
        %362 = vmatpush1.msra.mxu0 0.0
        %363 = vmatprep.subr.mxu0 0.0
        %364 = vmatpush1.msra.mxu0 0.0
        %365 = vmatprep.subr.mxu0 0.0
        %366 = vmatpush1.msra.mxu0 0.0
        %367 = vmatprep.subr.mxu0 0.0
        %368 = vmatpush1.msra.mxu0 0.0
        %369 = vmatprep.subr.mxu0 0.0
        %370 = vmatpush1.msra.mxu0 0.0
        %371 = vmatprep.subr.mxu0 0.0
        %372 = vmatpush1.msra.mxu0 0.0
        %373 = vmatprep.subr.mxu0 0.0
        %374 = vmatpush1.msra.mxu0 0.0
        %375 = vmatprep.subr.mxu0 0.0
        %376 = vmatpush1.msra.mxu0 0.0
        %377 = vmatprep.subr.mxu0 0.0
        %378 = vmatpush1.msra.mxu0 0.0
        %379 = vmatprep.subr.mxu0 0.0
        %380 = vmatpush1.msra.mxu0 0.0
        %381 = vmatprep.subr.mxu0 0.0
        %382 = vmatpush1.msra.mxu0 0.0
        %383 = vmatprep.subr.mxu0 0.0
        %384 = vmatpush1.msra.mxu0 0.0
        %385 = vmatprep.subr.mxu0 0.0
        %386 = vmatpush1.msra.mxu0 0.0
        %387 = vmatprep.subr.mxu0 0.0
        %388 = vmatpush1.msra.mxu0 0.0
        %389 = vmatprep.subr.mxu0 0.0
        %390 = vmatpush1.msra.mxu0 0.0
        %391 = vmatprep.subr.mxu0 0.0
        %392 = vmatpush1.msra.mxu0 0.0
        %393 = vmatprep.subr.mxu0 0.0
        %394 = vmatpush1.msra.mxu0 0.0
        %395 = vmatprep.subr.mxu0 0.0
        %396 = vmatpush1.msra.mxu0 0.0
        %397 = vmatprep.subr.mxu0 0.0
        %398 = vmatpush1.msra.mxu0 0.0
        %399 = vmatprep.subr.mxu0 0.0
        %400 = vmatpush1.msra.mxu0 0.0
        %401 = vmatprep.subr.mxu0 0.0
        %402 = vmatpush1.msra.mxu0 0.0
        %403 = vmatprep.subr.mxu0 0.0
        %404 = vmatpush1.msra.mxu0 0.0
        %405 = vmatprep.subr.mxu0 0.0
        %406 = vmatpush1.msra.mxu0 0.0
        %407 = vmatprep.subr.mxu0 0.0
        %408 = vmatpush1.msra.mxu0 0.0
        %409 = vmatprep.subr.mxu0 0.0
        %410 = vmatpush1.msra.mxu0 0.0
        %411 = vmatprep.mubr.f32.mxu0 0.0
        %412 = vmatmul.mubr.f32.gmra.mrb[0].mxu0 %v199
        %v413 = vpop.f32.mrb[0].mxu0
        %v414 = vadd.f32 0.0, %v413
        %v415 = vpop.f32.mrb[0].mxu0
        %416 = vdwg.mxu0
        %s417 = scalar_lea.vmem %s167, 48 [#allocation2]
        %v418 = vld [vmem:[%s417] sm:$0xff]
        %v419 = vld [vmem:[%s417 + $0x8] sm:$0xff]
        %420 = vmatprep.subr.mxu0 0.0
        %421 = vmatpush1.msra.mxu0 %v418
        %422 = vmatprep.subr.mxu0 0.0
        %423 = vmatpush1.msra.mxu0 %v419
        %424 = vmatprep.subr.mxu0 0.0
        %425 = vmatpush1.msra.mxu0 0.0
        %426 = vmatprep.subr.mxu0 0.0
        %427 = vmatpush1.msra.mxu0 0.0
        %428 = vmatprep.subr.mxu0 0.0
        %429 = vmatpush1.msra.mxu0 0.0
        %430 = vmatprep.subr.mxu0 0.0
        %431 = vmatpush1.msra.mxu0 0.0
        %432 = vmatprep.subr.mxu0 0.0
        %433 = vmatpush1.msra.mxu0 0.0
        %434 = vmatprep.subr.mxu0 0.0
        %435 = vmatpush1.msra.mxu0 0.0
        %436 = vmatprep.subr.mxu0 0.0
        %437 = vmatpush1.msra.mxu0 0.0
        %438 = vmatprep.subr.mxu0 0.0
        %439 = vmatpush1.msra.mxu0 0.0
        %440 = vmatprep.subr.mxu0 0.0
        %441 = vmatpush1.msra.mxu0 0.0
        %442 = vmatprep.subr.mxu0 0.0
        %443 = vmatpush1.msra.mxu0 0.0
        %444 = vmatprep.subr.mxu0 0.0
        %445 = vmatpush1.msra.mxu0 0.0
        %446 = vmatprep.subr.mxu0 0.0
        %447 = vmatpush1.msra.mxu0 0.0
        %448 = vmatprep.subr.mxu0 0.0
        %449 = vmatpush1.msra.mxu0 0.0
        %450 = vmatprep.subr.mxu0 0.0
        %451 = vmatpush1.msra.mxu0 0.0
        %452 = vmatprep.subr.mxu0 0.0
        %453 = vmatpush1.msra.mxu0 0.0
        %454 = vmatprep.subr.mxu0 0.0
        %455 = vmatpush1.msra.mxu0 0.0
        %456 = vmatprep.subr.mxu0 0.0
        %457 = vmatpush1.msra.mxu0 0.0
        %458 = vmatprep.subr.mxu0 0.0
        %459 = vmatpush1.msra.mxu0 0.0
        %460 = vmatprep.subr.mxu0 0.0
        %461 = vmatpush1.msra.mxu0 0.0
        %462 = vmatprep.subr.mxu0 0.0
        %463 = vmatpush1.msra.mxu0 0.0
        %464 = vmatprep.subr.mxu0 0.0
        %465 = vmatpush1.msra.mxu0 0.0
        %466 = vmatprep.subr.mxu0 0.0
        %467 = vmatpush1.msra.mxu0 0.0
        %468 = vmatprep.subr.mxu0 0.0
        %469 = vmatpush1.msra.mxu0 0.0
        %470 = vmatprep.subr.mxu0 0.0
        %471 = vmatpush1.msra.mxu0 0.0
        %472 = vmatprep.subr.mxu0 0.0
        %473 = vmatpush1.msra.mxu0 0.0
        %474 = vmatprep.subr.mxu0 0.0
        %475 = vmatpush1.msra.mxu0 0.0
        %476 = vmatprep.subr.mxu0 0.0
        %477 = vmatpush1.msra.mxu0 0.0
        %478 = vmatprep.subr.mxu0 0.0
        %479 = vmatpush1.msra.mxu0 0.0
        %480 = vmatprep.subr.mxu0 0.0
        %481 = vmatpush1.msra.mxu0 0.0
        %482 = vmatprep.subr.mxu0 0.0
        %483 = vmatpush1.msra.mxu0 0.0
        %484 = vmatprep.mubr.f32.mxu0 0.0
        %485 = vmatmul.mubr.f32.gmra.mrb[0].mxu0 %v199
        %v486 = vpop.f32.mrb[0].mxu0
        %v487 = vadd.f32 0.0, %v486
        %v488 = vpop.f32.mrb[0].mxu0
        %489 = vdwg.mxu0
        %v491 = vsel %vm197, %v268, 0
        %v494 = vsel %vm197, %v341, 0
        %v497 = vsel %vm197, %v414, 0
        %v500 = vsel %vm197, %v487, 0
        %502 = vmatprep.subr.mxu0 0.0
        %503 = vmatpush1.msra.mxu0 %v193
        %504 = vmatprep.subr.mxu0 0.0
        %505 = vmatpush1.msra.mxu0 %v194
        %506 = vmatprep.subr.mxu0 0.0
        %507 = vmatpush1.msra.mxu0 0.0
        %508 = vmatprep.subr.mxu0 0.0
        %509 = vmatpush1.msra.mxu0 0.0
        %510 = vmatprep.subr.mxu0 0.0
        %511 = vmatpush1.msra.mxu0 0.0
        %512 = vmatprep.subr.mxu0 0.0
        %513 = vmatpush1.msra.mxu0 0.0
        %514 = vmatprep.subr.mxu0 0.0
        %515 = vmatpush1.msra.mxu0 0.0
        %516 = vmatprep.subr.mxu0 0.0
        %517 = vmatpush1.msra.mxu0 0.0
        %518 = vmatprep.subr.mxu0 0.0
        %519 = vmatpush1.msra.mxu0 0.0
        %520 = vmatprep.subr.mxu0 0.0
        %521 = vmatpush1.msra.mxu0 0.0
        %522 = vmatprep.subr.mxu0 0.0
        %523 = vmatpush1.msra.mxu0 0.0
        %524 = vmatprep.subr.mxu0 0.0
        %525 = vmatpush1.msra.mxu0 0.0
        %526 = vmatprep.subr.mxu0 0.0
        %527 = vmatpush1.msra.mxu0 0.0
        %528 = vmatprep.subr.mxu0 0.0
        %529 = vmatpush1.msra.mxu0 0.0
        %530 = vmatprep.subr.mxu0 0.0
        %531 = vmatpush1.msra.mxu0 0.0
        %532 = vmatprep.subr.mxu0 0.0
        %533 = vmatpush1.msra.mxu0 0.0
        %534 = vmatprep.subr.mxu0 0.0
        %535 = vmatpush1.msra.mxu0 0.0
        %536 = vmatprep.subr.mxu0 0.0
        %537 = vmatpush1.msra.mxu0 0.0
        %538 = vmatprep.subr.mxu0 0.0
        %539 = vmatpush1.msra.mxu0 0.0
        %540 = vmatprep.subr.mxu0 0.0
        %541 = vmatpush1.msra.mxu0 0.0
        %542 = vmatprep.subr.mxu0 0.0
        %543 = vmatpush1.msra.mxu0 0.0
        %544 = vmatprep.subr.mxu0 0.0
        %545 = vmatpush1.msra.mxu0 0.0
        %546 = vmatprep.subr.mxu0 0.0
        %547 = vmatpush1.msra.mxu0 0.0
        %548 = vmatprep.subr.mxu0 0.0
        %549 = vmatpush1.msra.mxu0 0.0
        %550 = vmatprep.subr.mxu0 0.0
        %551 = vmatpush1.msra.mxu0 0.0
        %552 = vmatprep.subr.mxu0 0.0
        %553 = vmatpush1.msra.mxu0 0.0
        %554 = vmatprep.subr.mxu0 0.0
        %555 = vmatpush1.msra.mxu0 0.0
        %556 = vmatprep.subr.mxu0 0.0
        %557 = vmatpush1.msra.mxu0 0.0
        %558 = vmatprep.subr.mxu0 0.0
        %559 = vmatpush1.msra.mxu0 0.0
        %560 = vmatprep.subr.mxu0 0.0
        %561 = vmatpush1.msra.mxu0 0.0
        %562 = vmatprep.subr.mxu0 0.0
        %563 = vmatpush1.msra.mxu0 0.0
        %564 = vmatprep.subr.mxu0 0.0
        %565 = vmatpush1.msra.mxu0 0.0
        %566 = vmatprep.mubr.f32.mxu0 0.0
        %567 = vmatmul.mubr.f32.gmra.mrb[0].mxu0 %v491
        %v568 = vpop.f32.mrb[0].mxu0
        %v569 = vadd.f32 0.0, %v568
        %v570 = vpop.f32.mrb[0].mxu0
        %571 = vmatprep.mubr.f32.mxu0 0.0
        %572 = vmatmul.mubr.f32.gmra.mrb[0].mxu0 %v494
        %v573 = vpop.f32.mrb[0].mxu0
        %v574 = vadd.f32 0.0, %v573
        %v575 = vpop.f32.mrb[0].mxu0
        %576 = vmatprep.mubr.f32.mxu0 0.0
        %577 = vmatmul.mubr.f32.gmra.mrb[0].mxu0 %v497
        %v578 = vpop.f32.mrb[0].mxu0
        %v579 = vadd.f32 0.0, %v578
        %v580 = vpop.f32.mrb[0].mxu0
        %581 = vmatprep.mubr.f32.mxu0 0.0
        %582 = vmatmul.mubr.f32.gmra.mrb[0].mxu0 %v500
        %v583 = vpop.f32.mrb[0].mxu0
        %v584 = vadd.f32 0.0, %v583
        %v585 = vpop.f32.mrb[0].mxu0
        %586 = vdwg.mxu0
        %vm587 = vcmask 64512
        %588 = vst.msk [vmem:[%s189] sm:$0xff] %vm587, %v569
        %s589 = scalar_lea.vmem %s189, 8 [#allocation5]
        %590 = vst.msk [vmem:[%s589] sm:$0xff] %vm587, %v574
        %s591 = scalar_lea.vmem %s189, 16 [#allocation5]
        %592 = vst.msk [vmem:[%s591] sm:$0xff] %vm587, %v579
        %s593 = scalar_lea.vmem %s189, 24 [#allocation5]
        %594 = vst.msk [vmem:[%s593] sm:$0xff] %vm587, %v584
        %s595 = sand.u32 %s96, 1
        %s596 = scalar_lea.sflag [#allocation4], %s595
        %s597 = sand.u32 %s96, 1
        %s598 = smul.addr %s597, 32
        %s599 = scalar_lea.vmem [#allocation5], %s598
        // Predicated region
        $region37: #{tpu_custom_call.1} parent=31 // pred_check
          %p600 = pneg %p106
        $region38: #{tpu_custom_call.1} parent=31 // pred_check_branch
          %602 = sbr.rel (%p600) target = $region40
        $region39: #{tpu_custom_call.1} parent=31 // pred_region
          %s603 = smul.u32 4, %s20
          %s605 = ssub.s32 512, 512
          %606 = vsyncadd %s596, %s605
          %s607 = smul.addr %s603, 128
          %s608 = scalar_lea.hbm %s3, %s607
          %s609 = sshll.u32 %s599, 4
          %s610 = int_to_ptr.vmem [resolvable:$true] %s609
          %615 = dma.vmem_to_hbm [thread:$0]  %s610, 512, %s608, %s596, 128, 128, 8
        $region40: #{tpu_custom_call.1} parent=31 // pred_fallthru
          _
      $region32: #{tpu_custom_call.1} parent=5 // pred_fallthru
        _
      %p616 = scmp.le.s32.totalorder 2, %s15
      // Predicated region
      $region41: #{tpu_custom_call.1} parent=5 // pred_check
        %p617 = pneg %p616
      $region42: #{tpu_custom_call.1} parent=5 // pred_check_branch
        %619 = sbr.rel (%p617) target = $region44
      $region43: #{tpu_custom_call.1} parent=5 // pred_region
        %s620 = ssub.s32 %s15, 2
        // Predicated region
        $region45: #{tpu_custom_call.1} parent=43 // pred_check
          %p621 = pneg %p112
        $region46: #{tpu_custom_call.1} parent=43 // pred_check_branch
          %623 = sbr.rel (%p621) target = $region48
        $region47: #{tpu_custom_call.1} parent=43 // pred_region
          %s624 = sand.u32 %s97, 1
          %s625 = scalar_lea.sflag [#allocation4], %s624
          %s626 = sand.u32 %s97, 1
          %s627 = smul.addr %s626, 32
          %s628 = scalar_lea.vmem [#allocation5], %s627
          %629 = dma.done %s625, 512
        $region48: #{tpu_custom_call.1} parent=43 // pred_fallthru
          _
      $region44: #{tpu_custom_call.1} parent=5 // pred_fallthru
        _
    $region6: #{tpu_custom_call.1} parent=1 // loop_footer
      %s19 = sadd.s32 1, %s15
    $region7: #{tpu_custom_call.1} parent=1 // loop_footer_branch
      %14 = sbr.rel target = $region3
    $region8: #{tpu_custom_call.1} parent=1 // loop_exit
      _
    %630 = vsyncpa [#allocation3], 1
    %s631 = scalar_lea.sflag [#allocation3], 1
    %632 = vsyncpa %s631, 1
    %633 = vsyncpa [#allocation4], 1
    %s634 = scalar_lea.sflag [#allocation4], 1
    %635 = vsyncpa %s634, 1

</llo_original>
